<compile_context>
chip_gen: v6e
topology: v6e:2x2x1
jax: 0.10.0
libtpu: 0.0.40
codegen_flags: <defaults>
</compile_context>

<pallas_src>
from functools import partial

import jax
import jax.numpy as jnp
from jax.experimental import pallas as pl
from jax.experimental.pallas import tpu as pltpu


def _round_up(x, m):
    return (x + m - 1) // m * m


def _make_kernel(d_out_valid, d_out_padded):
    """Build the fused linear + log-softmax kernel.

    d_out_valid:  number of real classes.
    d_out_padded: lane-padded class count seen by the kernel (multiple of 128).
    """
    needs_mask = d_out_valid != d_out_padded

    def kernel(x_ref, w_ref, out_ref):
        # x_ref:  [TILE_N, D_in_p]   (activations, possibly bf16)
        # w_ref:  [D_out_p, D_in_p]  (PyTorch Linear layout, resident across grid)
        # out_ref:[TILE_N, D_out_p]  f32, lane-dense stores
        x = x_ref[...]
        w = w_ref[...]

        # X @ W.T on the MXU without materializing a transpose:
        # contract dim 1 of X with dim 1 of W, accumulate in f32.
        logits = jax.lax.dot_general(
            x, w,
            dimension_numbers=(((1,), (1,)), ((), ())),
            preferred_element_type=jnp.float32,
        )

        if needs_mask:
            # Padded classes must not contribute to max / sum(exp).
            col = jax.lax.broadcasted_iota(jnp.int32, logits.shape, 1)
            logits = jnp.where(col < d_out_valid, logits, -jnp.inf)

        # Numerically-stable log-softmax along the class axis (dim=1).
        m = jnp.max(logits, axis=-1, keepdims=True)
        shifted = logits - m                      # -inf on padded classes
        sumexp = jnp.sum(jnp.exp(shifted), axis=-1, keepdims=True)  # exp(-inf)=0
        out_ref[...] = (shifted - jnp.log(sumexp)).astype(out_ref.dtype)

    return kernel


@partial(jax.jit, static_argnames=("tile_n", "compute_dtype"))
def logitreg_forward(x, weight, *, tile_n=256, compute_dtype=jnp.float32):
    """x: [N, D_in]; weight: [D_out, D_in] (PyTorch Linear layout, no bias).

    Returns log_softmax(x @ weight.T, axis=1) as [N, D_out] float32.
    compute_dtype controls the matmul input dtype (use jnp.bfloat16 on
    v6e/v7x for ~2x MXU rate and half the X/W HBM bytes; accumulation and the
    log-softmax stay in f32).
    """
    n, d_in = x.shape
    d_out, d_in_w = weight.shape
    assert d_in == d_in_w, "weight must be [D_out, D_in]"

    # Lane/MXU alignment: pad K (features) and the class axis to 128, batch to
    # a sublane-friendly tile.
    d_in_p = _round_up(d_in, 128)
    d_out_p = _round_up(d_out, 128)
    tile_n = max(8, min(tile_n, _round_up(n, 8)))
    n_p = _round_up(n, tile_n)

    xp = x.astype(compute_dtype)
    if (n_p, d_in_p) != (n, d_in):
        xp = jnp.pad(xp, ((0, n_p - n), (0, d_in_p - d_in)))
    wp = weight.astype(compute_dtype)
    if (d_out_p, d_in_p) != (d_out, d_in):
        wp = jnp.pad(wp, ((0, d_out_p - d_out), (0, d_in_p - d_in)))

    grid = (n_p // tile_n,)

    in_bytes = jnp.dtype(compute_dtype).itemsize
    # Double-buffered X and output tiles + double-buffered (but constant) weight.
    vmem_need = (2 * tile_n * d_in_p * in_bytes
                 + 2 * tile_n * d_out_p * 4
                 + 2 * d_out_p * d_in_p * in_bytes
                 + (2 << 20))
    vmem_limit = int(min(max(vmem_need, 32 << 20), 48 << 20))

    cost = pl.CostEstimate(
        flops=2 * n_p * d_in_p * d_out_p,
        transcendentals=n_p * (d_out_p + 1),  # exp per logit + log per row
        bytes_accessed=(xp.size * in_bytes
                        + wp.size * in_bytes
                        + n_p * d_out_p * 4),
    )

    # TODO(synk): for vocab-scale D_out or very large D_in, add a class/K grid
    # axis ("arbitrary") with an online logsumexp in VMEM scratch instead of
    # keeping the whole weight resident.
    out_p = pl.pallas_call(
        _make_kernel(d_out, d_out_p),
        out_shape=jax.ShapeDtypeStruct((n_p, d_out_p), jnp.float32),
        grid_spec=pltpu.PrefetchScalarGridSpec(
            num_scalar_prefetch=0,
            grid=grid,
            in_specs=[
                pl.BlockSpec((tile_n, d_in_p), lambda i: (i, 0)),
                pl.BlockSpec((d_out_p, d_in_p), lambda i: (0, 0)),  # resident
            ],
            out_specs=pl.BlockSpec((tile_n, d_out_p), lambda i: (i, 0)),
        ),
        compiler_params=pltpu.CompilerParams(
            dimension_semantics=("parallel",),
            vmem_limit_bytes=vmem_limit,
        ),
        cost_estimate=cost,
    )(xp, wp)

    return out_p[:n, :d_out]


def _reference_forward(x, weight):
    logits = x @ weight.T
    return jax.nn.log_softmax(logits, axis=1)


if __name__ == "__main__":
    key = jax.random.PRNGKey(0)

    # --- Case 1: small shapes consistent with the module (f32 matmul) -------
    N, D_in, D_out = 8, 32, 16
    kx, kw, kx2, kw2 = jax.random.split(key, 4)

    x = jax.random.normal(kx, (N, D_in), dtype=jnp.float32)
    bound = 1.0 / jnp.sqrt(jnp.float32(D_in))
    weight = jax.random.uniform(
        kw, (D_out, D_in), dtype=jnp.float32, minval=-bound, maxval=bound
    )

    out = jax.block_until_ready(logitreg_forward(x, weight))
    ref = _reference_forward(x, weight)
    assert out.shape == (N, D_out)
    assert jnp.allclose(out, ref, atol=1e-5, rtol=1e-5)
    assert jnp.allclose(jnp.sum(jnp.exp(out), axis=1), 1.0, atol=1e-5)

    # --- Case 2: non-aligned shapes exercising batch tiling + class padding --
    N2, D_in2, D_out2 = 300, 200, 10
    x2 = jax.random.normal(kx2, (N2, D_in2), dtype=jnp.float32)
    bound2 = 1.0 / jnp.sqrt(jnp.float32(D_in2))
    weight2 = jax.random.uniform(
        kw2, (D_out2, D_in2), dtype=jnp.float32, minval=-bound2, maxval=bound2
    )

    out2 = jax.block_until_ready(logitreg_forward(x2, weight2, tile_n=128))
    ref2 = _reference_forward(x2, weight2)
    assert out2.shape == (N2, D_out2)
    assert jnp.allclose(out2, ref2, atol=1e-4, rtol=1e-4)
    assert jnp.allclose(jnp.sum(jnp.exp(out2), axis=1), 1.0, atol=1e-4)

    # --- Case 3: bf16 matmul inputs (v6e/v7x fast path), f32 accumulation ----
    out_bf16 = jax.block_until_ready(
        logitreg_forward(x, weight, compute_dtype=jnp.bfloat16)
    )
    assert out_bf16.shape == (N, D_out)
    assert jnp.allclose(out_bf16, ref, atol=5e-2, rtol=5e-2)
    assert jnp.allclose(jnp.sum(jnp.exp(out_bf16), axis=1), 1.0, atol=1e-3)

    print("KERNEL_OK")
</pallas_src>

<mosaic_0001>
module attributes {stable_mosaic.version = 11 : i64} {
  func.func @kernel(%arg0: i32, %arg1: memref<8x128xf32, #tpu.memory_space<vmem>>, %arg2: memref<128x128xf32, #tpu.memory_space<vmem>>, %arg3: memref<8x128xf32, #tpu.memory_space<vmem>>) attributes {dimension_semantics = [#tpu.dimension_semantics<parallel>], iteration_bounds = array<i64: 1>, scalar_prefetch = 0 : i64, scratch_operands = 0 : i64, tpu.core_type = #tpu.core_type<tc>, window_params = [{transform_indices = @transform_0, window_bounds = array<i64: 8, 128>}, {pipeline_mode = #tpu.pipeline_mode<synchronous>, transform_indices = @transform_1, window_bounds = array<i64: 128, 128>}, {transform_indices = @transform_2, window_bounds = array<i64: 8, 128>}]} {
    %c0 = arith.constant 0 : index
    %c0_0 = arith.constant 0 : index
    %0 = vector.load %arg1[%c0, %c0_0] : memref<8x128xf32, #tpu.memory_space<vmem>>, vector<8x128xf32>
    %c0_1 = arith.constant 0 : index
    %c0_2 = arith.constant 0 : index
    %1 = vector.load %arg2[%c0_1, %c0_2] : memref<128x128xf32, #tpu.memory_space<vmem>>, vector<128x128xf32>
    %cst = arith.constant dense<0.000000e+00> : vector<8x128xf32>
    %2 = tpu.matmul %0, %1, %cst {dimension_numbers = #tpu.dot_dimension_numbers<[1], [1], [0], [0], [0, 0, 1, 0], [], []>} : vector<8x128xf32>, vector<128x128xf32>, vector<8x128xf32> -> vector<8x128xf32>
    %3 = tpu.iota {dimensions = array<i32: 1>} : vector<8x128xi32>
    %c16_i32 = arith.constant 16 : i32
    %4 = vector.broadcast %c16_i32 : i32 to vector<8x128xi32>
    %5 = arith.cmpi slt, %3, %4 : vector<8x128xi32>
    %cst_3 = arith.constant 0xFF800000 : f32
    %6 = vector.broadcast %cst_3 : f32 to vector<8x128xf32>
    %7 = arith.select %5, %2, %6 : vector<8x128xi1>, vector<8x128xf32>
    %cst_4 = arith.constant dense<0xFF800000> : vector<8xf32>
    %8 = vector.multi_reduction <maximumf>, %7, %cst_4 [1] : vector<8x128xf32> to vector<8xf32>
    %9 = vector.shape_cast %8 : vector<8xf32> to vector<8x1xf32>
    %10 = vector.broadcast %9 : vector<8x1xf32> to vector<8x128xf32>
    %11 = arith.subf %7, %10 : vector<8x128xf32>
    %12 = math.exp %11 : vector<8x128xf32>
    %cst_5 = arith.constant dense<0.000000e+00> : vector<8xf32>
    %13 = vector.multi_reduction <add>, %12, %cst_5 [1] : vector<8x128xf32> to vector<8xf32>
    %14 = vector.shape_cast %13 : vector<8xf32> to vector<8x1xf32>
    %15 = math.log %14 : vector<8x1xf32>
    %16 = vector.broadcast %15 : vector<8x1xf32> to vector<8x128xf32>
    %17 = arith.subf %11, %16 : vector<8x128xf32>
    %c0_6 = arith.constant 0 : index
    %c0_7 = arith.constant 0 : index
    %18 = vector.load %arg3[%c0_6, %c0_7] : memref<8x128xf32, #tpu.memory_space<vmem>>, vector<8x128xf32>
    tpu.vector_store %arg3[%c0_6, %c0_7], %17 {strides = array<i32>} : memref<8x128xf32, #tpu.memory_space<vmem>>, vector<8x128xf32>,
    return
  }
  func.func @transform_0(%arg0: i32) -> (i32, i32) {
    %c0_i32 = arith.constant 0 : i32
    %c0_i32_0 = arith.constant 0 : i32
    return %arg0, %c0_i32 : i32, i32
  }
  func.func @transform_1(%arg0: i32) -> (i32, i32) {
    %c0_i32 = arith.constant 0 : i32
    %c0_i32_0 = arith.constant 0 : i32
    %c0_i32_1 = arith.constant 0 : i32
    return %c0_i32, %c0_i32_0 : i32, i32
  }
  func.func @transform_2(%arg0: i32) -> (i32, i32) {
    %c0_i32 = arith.constant 0 : i32
    %c0_i32_0 = arith.constant 0 : i32
    return %arg0, %c0_i32 : i32, i32
  }
}

</mosaic_0001>

<llo_original>
// kernel: logitreg_forward.1
$region0: #{logitreg_forward.1}
  #allocation0 [shape = 'u32[]', space=smem, size = 0x4, offset = 0x4, fixed_abs, tag = 'smem constant byte address 0x4 - core index']
  #allocation1 [shape = 'u32[144,128]{1,0:T(1,128)}', space=vmem, size = 0x12000, scoped, tag = 'internal scratch']
  %s0 = inlined_call_operand.vmem [shape: f32[8,128], index: 0, kind: input, shape index: {}]
  %s1 = inlined_call_operand.vmem [shape: f32[128,128], index: 1, kind: input, shape index: {}]
  %s2 = inlined_call_operand.hbm [shape: f32[8,128], index: 2, kind: output, shape index: {}]
  %s3 = sld [smem:[#allocation0]]
  $region18: #{logitreg_forward.1} parent=0
    _
  %s5 = ssub.s32 1, %s3
  %s6 = scalar_select 0, %s5, %s3
  $region1: #{logitreg_forward.1} parent=0
    #allocation2 [shape = 'u8[4096]{0}', space=vmem, size = 0x1000, scoped, tag = 'output window, operand 0, single buffered']
    #allocation3 [shape = 's32[1]{0}', space=sflag, size = 0x4, scoped, tag = 'scoped memory for logitreg_forward.1']
    %7 = vsyncpa [#allocation3], 0
    // Predicated region
    $region2: #{logitreg_forward.1} parent=1 // pred_check
      _
    $region3: #{logitreg_forward.1} parent=1 // pred_check_branch
      %9 = sbr.rel (0) target = $region5
    $region4: #{logitreg_forward.1} parent=1 // pred_region
      _
    $region5: #{logitreg_forward.1} parent=1 // pred_fallthru
      _
    // Predicated region
    $region6: #{logitreg_forward.1} parent=1 // pred_check
      _
    $region7: #{logitreg_forward.1} parent=1 // pred_check_branch
      %11 = sbr.rel (0) target = $region9
    $region8: #{logitreg_forward.1} parent=1 // pred_region
      _
    $region9: #{logitreg_forward.1} parent=1 // pred_fallthru
      _
    %v12 = vld [vmem:[%s0] sm:$0xff]
    %v13 = vld [vmem:[%s1] sm:$0xff]
    %v14 = vld [vmem:[%s1 + $0x8] sm:$0xff]
    %v15 = vld [vmem:[%s1 + $0x10] sm:$0xff]
    %v16 = vld [vmem:[%s1 + $0x18] sm:$0xff]
    %v17 = vld [vmem:[%s1 + $0x20] sm:$0xff]
    %v18 = vld [vmem:[%s1 + $0x28] sm:$0xff]
    %v19 = vld [vmem:[%s1 + $0x30] sm:$0xff]
    %v20 = vld [vmem:[%s1 + $0x38] sm:$0xff]
    %v21 = vld [vmem:[%s1 + $0x40] sm:$0xff]
    %v22 = vld [vmem:[%s1 + $0x48] sm:$0xff]
    %v23 = vld [vmem:[%s1 + $0x50] sm:$0xff]
    %v24 = vld [vmem:[%s1 + $0x58] sm:$0xff]
    %v25 = vld [vmem:[%s1 + $0x60] sm:$0xff]
    %v26 = vld [vmem:[%s1 + $0x68] sm:$0xff]
    %v27 = vld [vmem:[%s1 + $0x70] sm:$0xff]
    %v28 = vld [vmem:[%s1 + $0x78] sm:$0xff]
    %29 = vmatprep.subr.mxu0 0.0
    %30 = vmatpush1.xpose.msra.mxu0 %v28
    %31 = vmatprep.subr.mxu0 0.0
    %32 = vmatpush1.xpose.msra.mxu0 %v27
    %33 = vmatprep.subr.mxu0 0.0
    %34 = vmatpush1.xpose.msra.mxu0 %v26
    %35 = vmatprep.subr.mxu0 0.0
    %36 = vmatpush1.xpose.msra.mxu0 %v25
    %37 = vmatprep.subr.mxu0 0.0
    %38 = vmatpush1.xpose.msra.mxu0 %v24
    %39 = vmatprep.subr.mxu0 0.0
    %40 = vmatpush1.xpose.msra.mxu0 %v23
    %41 = vmatprep.subr.mxu0 0.0
    %42 = vmatpush1.xpose.msra.mxu0 %v22
    %43 = vmatprep.subr.mxu0 0.0
    %44 = vmatpush1.xpose.msra.mxu0 %v21
    %45 = vmatprep.subr.mxu0 0.0
    %46 = vmatpush1.xpose.msra.mxu0 %v20
    %47 = vmatprep.subr.mxu0 0.0
    %48 = vmatpush1.xpose.msra.mxu0 %v19
    %49 = vmatprep.subr.mxu0 0.0
    %50 = vmatpush1.xpose.msra.mxu0 %v18
    %51 = vmatprep.subr.mxu0 0.0
    %52 = vmatpush1.xpose.msra.mxu0 %v17
    %53 = vmatprep.subr.mxu0 0.0
    %54 = vmatpush1.xpose.msra.mxu0 %v16
    %55 = vmatprep.subr.mxu0 0.0
    %56 = vmatpush1.xpose.msra.mxu0 %v15
    %57 = vmatprep.subr.mxu0 0.0
    %58 = vmatpush1.xpose.msra.mxu0 %v14
    %59 = vmatprep.subr.mxu0 0.0
    %60 = vmatpush1.xpose.msra.mxu0 %v13
    %61 = vmatprep.subr.mxu0 0.0
    %62 = vmatpush2.xpose.msra.mxu0 0.0
    %63 = vmatprep.subr.mxu0 0.0
    %64 = vmatpush2.xpose.msra.mxu0 0.0
    %65 = vmatprep.subr.mxu0 0.0
    %66 = vmatpush2.xpose.msra.mxu0 0.0
    %67 = vmatprep.subr.mxu0 0.0
    %68 = vmatpush2.xpose.msra.mxu0 0.0
    %69 = vmatprep.subr.mxu0 0.0
    %70 = vmatpush2.xpose.msra.mxu0 0.0
    %71 = vmatprep.subr.mxu0 0.0
    %72 = vmatpush2.xpose.msra.mxu0 0.0
    %73 = vmatprep.subr.mxu0 0.0
    %74 = vmatpush2.xpose.msra.mxu0 0.0
    %75 = vmatprep.subr.mxu0 0.0
    %76 = vmatpush2.xpose.msra.mxu0 0.0
    %77 = vmatprep.subr.mxu0 0.0
    %78 = vmatpush2.xpose.msra.mxu0 0.0
    %79 = vmatprep.subr.mxu0 0.0
    %80 = vmatpush2.xpose.msra.mxu0 0.0
    %81 = vmatprep.subr.mxu0 0.0
    %82 = vmatpush2.xpose.msra.mxu0 0.0
    %83 = vmatprep.subr.mxu0 0.0
    %84 = vmatpush2.xpose.msra.mxu0 0.0
    %85 = vmatprep.subr.mxu0 0.0
    %86 = vmatpush2.xpose.msra.mxu0 0.0
    %87 = vmatprep.subr.mxu0 0.0
    %88 = vmatpush2.xpose.msra.mxu0 0.0
    %89 = vmatprep.subr.mxu0 0.0
    %90 = vmatpush2.xpose.msra.mxu0 0.0
    %91 = vmatprep.subr.mxu0 0.0
    %92 = vmatpush2.xpose.msra.mxu0 0.0
    %93 = vmatprep.mubr.f32.mxu0 0.0
    %94 = vmatmul.mubr.f32.gmra.mxu0 %v12
    %v95 = vpop.f32.mrf.mxu0
    %v96 = vadd.f32 0.0, %v95
    %v97 = vpop.f32.mrf.mxu0
    %98 = vdwg.mxu0
    %v99 = vlaneseq
    %v100 = vand.u32 %v99, 127
    %vm101 = vcmp.lt.s32.totalorder %v100, 16
    %v102 = vsel %vm101, %v96, -inf
    %103 = vmax.xlane.f32.xlu0 %v102
    %v104 = vpop.xlane.xlu0 %103
    %v105 = vsub.f32 %v102, %v104
    %v106 = vmul.f32 %v105, 1.442695
    %v107 = vpow.pop %v106
    %108 = vadd.xlane.f32.xlu0 %v107
    %v109 = vpop.xlane.xlu0 %108
    %v110 = vlog2.pop %v109
    %v111 = vmul.f32 %v110, 0.6931472
    %v112 = vsub.f32 %v105, %v111
    %113 = vst [vmem:[#allocation2] sm:$0xff] %v112
    // Predicated region
    $region10: #{logitreg_forward.1} parent=1 // pred_check
      _
    $region11: #{logitreg_forward.1} parent=1 // pred_check_branch
      %115 = sbr.rel (0) target = $region13
    $region12: #{logitreg_forward.1} parent=1 // pred_region
      %s117 = ssub.s32 128, 128
      %118 = vsyncadd [#allocation3], %s117
      %s120 = sshll.u32 [#allocation2], 4
      %s121 = int_to_ptr.vmem [resolvable:$true] %s120
      %123 = dma.vmem_to_hbm [thread:$0]  %s121, 128, %s2, [#allocation3]
    $region13: #{logitreg_forward.1} parent=1 // pred_fallthru
      _
    // Predicated region
    $region14: #{logitreg_forward.1} parent=1 // pred_check
      _
    $region15: #{logitreg_forward.1} parent=1 // pred_check_branch
      %125 = sbr.rel (0) target = $region17
    $region16: #{logitreg_forward.1} parent=1 // pred_region
      %126 = dma.done [#allocation3], 128
    $region17: #{logitreg_forward.1} parent=1 // pred_fallthru
      _
    %127 = vsyncpa [#allocation3], 1

</llo_original>
